<compile_context>
chip_gen: v7x
topology: tpu7x:2x2x1
jax: 0.10.0
libtpu: 0.0.40
codegen_flags: <defaults>
</compile_context>

<pallas_src>
import functools
import math

import jax
import jax.numpy as jnp
from jax.experimental import pallas as pl
from jax.experimental.pallas import tpu as pltpu

_LANES = 128
_SUBLANES = 8
_MIN_PAD_ELEMS = _SUBLANES * _LANES      # minimal host-side pad granule (1024 elems)
_BLOCK_ROWS_X = 2048                     # 2048 x 128 f32 = 1 MiB per x / x_hat block
_BLOCK_ROWS_Y_CAP = 1024
_BLOCK_ROWS_Z_CAP = 512
_LAMBDA = 0.025                          # constant_lambda=True path
_LOG_HALF = math.log(0.5)
_INV_LN2 = 1.0 / math.log(2.0)


def _tensorcores_per_chip():
    """2 on multi-TensorCore chips (v4 megacore / v7x), 1 on v5e / v6e."""
    try:
        kind = jax.devices()[0].device_kind.lower()
    except Exception:
        return 1
    return 2 if any(tag in kind for tag in ("v4", "v7", "7x")) else 1


def _rd_partial_kernel(x_ref, xh_ref, mu_ref, sg_ref, y_ref, z_ref,
                       acc_d_ref, acc_y_ref, acc_z_ref,
                       *, num_cores, nblk_x, nblk_y, nblk_z,
                       tail_x, tail_y, tail_z):
    """Accumulates lane-wise partial sums for the three reduction terms.

    acc_d : sum (x - x_hat)^2
    acc_y : sum log|erf(u) - erf(l)|   (Gaussian-CDF latent rate, 0.5 folded out)
    acc_z : sum log|sig(z+1/2) - sig(z-1/2)|   (sigmoid-CDF hyperlatent rate)

    Note: log of an underflowing CDF difference is -inf, exactly as in the
    reference math (no epsilon clamp in the PyTorch module).
    """
    f32 = jnp.float32
    core = pl.program_id(0)
    step = pl.program_id(1)
    # Round-robin block assignment across TensorCores: the erf/log-heavy latent
    # blocks are split evenly between both v7x cores (no-op when num_cores==1).
    blk = step * num_cores + core

    @pl.when(step == 0)
    def _init():
        acc_d_ref[...] = jnp.zeros_like(acc_d_ref)
        acc_y_ref[...] = jnp.zeros_like(acc_y_ref)
        acc_z_ref[...] = jnp.zeros_like(acc_z_ref)

    def fold(v):
        # (rows, 128) -> (1, 8, 128): pure VPU vreg adds, no per-step XLU reduce.
        rows = v.shape[0]
        return jnp.sum(v.reshape(rows // _SUBLANES, _SUBLANES, _LANES), axis=0)[None]

    def accumulate(acc_ref, term, nblk, n_tail):
        # Interior blocks: unmasked fast path.  Only each stream's final block
        # builds an iota mask; it covers both the explicit lane padding and the
        # DMA-undefined ragged region of the boundary block.
        @pl.when(blk < nblk - 1)
        def _interior():
            acc_ref[...] += fold(term)

        @pl.when(blk == nblk - 1)
        def _tail():
            row = jax.lax.broadcasted_iota(jnp.int32, term.shape, 0)
            lane = jax.lax.broadcasted_iota(jnp.int32, term.shape, 1)
            valid = (row * _LANES + lane) < n_tail   # block-local index: no i32 overflow
            acc_ref[...] += fold(jnp.where(valid, term, f32(0.0)))

    # ---- distortion: sum (x - x_hat)^2 ----
    @pl.when(blk < nblk_x)
    def _distortion():
        d = x_ref[...].astype(f32) - xh_ref[...].astype(f32)
        accumulate(acc_d_ref, d * d, nblk_x, tail_x)

    # ---- latent rate: Phi(y+1/2) - Phi(y-1/2) = 0.5*(erf(u') - erf(l'));
    #      the 0.5 is folded into the wrapper finalize as n_y * log(0.5). ----
    @pl.when(blk < nblk_y)
    def _latent():
        mu = mu_ref[...].astype(f32)
        sg = sg_ref[...].astype(f32)
        y = y_ref[...].astype(f32)
        r = pl.reciprocal(sg, approx=True)            # EUP vrcp (~12 bit)
        r = r * (f32(2.0) - sg * r)                   # one Newton step -> ~f32 accurate
        inv = r * f32(math.sqrt(2.0))
        dy = y - mu
        erf_u = jax.lax.erf((dy + f32(0.5)) * inv)
        erf_l = jax.lax.erf((dy - f32(0.5)) * inv)
        term = jnp.log(jnp.abs(erf_u - erf_l))
        accumulate(acc_y_ref, term, nblk_y, tail_y)

    # ---- hyperlatent rate: sum log|sigmoid(z+1/2) - sigmoid(z-1/2)| ----
    @pl.when(blk < nblk_z)
    def _hyper():
        zv = z_ref[...].astype(f32)
        diff = jnp.abs(jax.nn.sigmoid(zv + f32(0.5)) - jax.nn.sigmoid(zv - f32(0.5)))
        accumulate(acc_z_ref, jnp.log(diff), nblk_z, tail_z)


def rate_distortion_loss(x, x_hat, mu, sigma, y_hat, z, lam):
    """Matches RateDistortionLoss(type='sigmoid', constant_lambda=True).forward(...)."""
    n_x, n_y, n_z = x.size, y_hat.size, z.size
    batch = x.shape[0]
    num_cores = _tensorcores_per_chip()

    def to_rows(a):
        # Lane-dense (rows, 128) view with only the minimal (8,128)-granule pad.
        # For lane-aligned production sizes this is a free reshape (no HBM copy);
        # the ragged tail is masked in-kernel, so pad values never matter.
        flat = a.reshape(-1)
        pad = (-flat.shape[0]) % _MIN_PAD_ELEMS
        if pad:
            flat = jnp.pad(flat, (0, pad))
        return flat.reshape(-1, _LANES)

    x2, xh2 = to_rows(x), to_rows(x_hat)
    mu2, sg2, y2 = to_rows(mu), to_rows(sigma), to_rows(y_hat)
    z2 = to_rows(z)
    rows_x, rows_y, rows_z = x2.shape[0], mu2.shape[0], z2.shape[0]

    # The dominant, mem-bound x/x_hat streams drive the grid size.
    bx = min(_BLOCK_ROWS_X, rows_x)
    nblk_x = pl.cdiv(rows_x, bx)
    total0 = pl.cdiv(nblk_x, num_cores) * num_cores

    def pick_block(rows, cap):
        # Spread this stream over ~every grid block so its transcendental work
        # hides under the x/x_hat DMA instead of front-loading the grid.
        tgt = ((pl.cdiv(rows, total0) + _SUBLANES - 1) // _SUBLANES) * _SUBLANES
        return max(_SUBLANES, min(cap, rows, tgt))

    by = pick_block(rows_y, _BLOCK_ROWS_Y_CAP)
    bz = pick_block(rows_z, _BLOCK_ROWS_Z_CAP)
    nblk_y = pl.cdiv(rows_y, by)
    nblk_z = pl.cdiv(rows_z, bz)
    steps = pl.cdiv(max(nblk_x, nblk_y, nblk_z), num_cores)

    # Valid element count in each stream's final block (true sizes, so both the
    # explicit pad and the DMA-undefined boundary region get masked out).
    tail_x = n_x - (nblk_x - 1) * bx * _LANES
    tail_y = n_y - (nblk_y - 1) * by * _LANES
    tail_z = n_z - (nblk_z - 1) * bz * _LANES

    def in_spec(block_rows, nblk):
        def imap(c, s, nblk=nblk):
            # Clamp finished streams; compute is gated by pl.when(blk < nblk),
            # and an unchanged block index issues no new DMA.
            return (jnp.minimum(s * num_cores + c, nblk - 1), 0)
        return pl.BlockSpec((block_rows, _LANES), imap)

    acc_spec = pl.BlockSpec((1, _SUBLANES, _LANES), lambda c, s: (c, 0, 0))
    acc_shape = jax.ShapeDtypeStruct((num_cores, _SUBLANES, _LANES), jnp.float32)

    kernel = functools.partial(
        _rd_partial_kernel,
        num_cores=num_cores,
        nblk_x=nblk_x, nblk_y=nblk_y, nblk_z=nblk_z,
        tail_x=tail_x, tail_y=tail_y, tail_z=tail_z)

    acc_d, acc_y, acc_z = pl.pallas_call(
        kernel,
        grid=(num_cores, steps),
        in_specs=[in_spec(bx, nblk_x), in_spec(bx, nblk_x),
                  in_spec(by, nblk_y), in_spec(by, nblk_y), in_spec(by, nblk_y),
                  in_spec(bz, nblk_z)],
        out_specs=(acc_spec, acc_spec, acc_spec),
        out_shape=(acc_shape, acc_shape, acc_shape),
        compiler_params=pltpu.CompilerParams(
            dimension_semantics=("parallel", "arbitrary"),
            vmem_limit_bytes=32 * 1024 * 1024),
    )(x2, xh2, mu2, sg2, y2, z2)

    # Finalize: one cross-lane/cross-core reduction per term plus all scalings
    # (1/N, 1/B, 1/ln2, the folded log(0.5), lambda, negation).
    distortion = jnp.sum(acc_d) / n_x
    latent_rate = -(jnp.sum(acc_y) + n_y * _LOG_HALF) * _INV_LN2 / batch
    hyperlatent_rate = -jnp.sum(acc_z) * _INV_LN2 / batch

    new_lam = _LAMBDA   # constant_lambda=True: exact Python constant 0.025
    loss = new_lam * distortion + latent_rate + hyperlatent_rate
    return loss, new_lam


if __name__ == "__main__":
    key = jax.random.PRNGKey(0)
    k = jax.random.split(key, 7)

    # Small shapes consistent with an image-compression forward pass:
    #   x, x_hat          : image / reconstruction   [B, 3, 16, 16]
    #   mu, sigma, y_hat  : latent params / latents  [B, 4,  8,  8]
    #   z                 : hyperlatents             [B, 4,  4,  4]
    B = 2
    x     = jax.random.normal(k[0], (B, 3, 16, 16), dtype=jnp.float32)
    x_hat = x + 0.1 * jax.random.normal(k[1], (B, 3, 16, 16), dtype=jnp.float32)
    mu    = jax.random.normal(k[2], (B, 4, 8, 8), dtype=jnp.float32)
    sigma = 0.5 + jax.nn.softplus(jax.random.normal(k[3], (B, 4, 8, 8), dtype=jnp.float32))
    y_hat = jax.random.normal(k[4], (B, 4, 8, 8), dtype=jnp.float32)
    z     = jax.random.normal(k[5], (B, 4, 4, 4), dtype=jnp.float32)
    lam_in = 0.01   # ignored (constant_lambda=True)

    loss, lam_out = rate_distortion_loss(x, x_hat, mu, sigma, y_hat, z, lam_in)
    loss = jax.block_until_ready(loss)

    # Pure-JAX reference (same math as the PyTorch module).
    def ref(x, x_hat, mu, sigma, y_hat, z):
        distortion = jnp.mean((x - x_hat) ** 2)
        cdf = lambda pt: 0.5 * (1.0 + jax.lax.erf((pt - mu) / ((2.0 ** -0.5) * sigma)))
        lr = -jnp.sum(jnp.log2(jnp.abs(cdf(y_hat + 0.5) - cdf(y_hat - 0.5))),
                      axis=(1, 2, 3))
        hr = -jnp.sum(jnp.log2(jnp.abs(jax.nn.sigmoid(z + 0.5) - jax.nn.sigmoid(z - 0.5))),
                      axis=(1, 2, 3))
        return _LAMBDA * distortion + jnp.mean(lr) + jnp.mean(hr)

    ref_loss = ref(x, x_hat, mu, sigma, y_hat, z)
    assert jnp.allclose(loss, ref_loss, rtol=1e-4, atol=1e-4), (loss, ref_loss)
    assert float(lam_out) == 0.025

    print("KERNEL_OK")
</pallas_src>

<mosaic_0001>
module attributes {stable_mosaic.version = 11 : i64} {
  func.func @_rd_partial_kernel(%arg0: i32, %arg1: i32, %arg2: memref<16x128xf32, #tpu.memory_space<vmem>>, %arg3: memref<16x128xf32, #tpu.memory_space<vmem>>, %arg4: memref<8x128xf32, #tpu.memory_space<vmem>>, %arg5: memref<8x128xf32, #tpu.memory_space<vmem>>, %arg6: memref<8x128xf32, #tpu.memory_space<vmem>>, %arg7: memref<8x128xf32, #tpu.memory_space<vmem>>, %arg8: memref<1x8x128xf32, #tpu.memory_space<vmem>>, %arg9: memref<1x8x128xf32, #tpu.memory_space<vmem>>, %arg10: memref<1x8x128xf32, #tpu.memory_space<vmem>>) attributes {dimension_semantics = [#tpu.dimension_semantics<parallel>, #tpu.dimension_semantics<arbitrary>], iteration_bounds = array<i64: 1, 1>, scalar_prefetch = 0 : i64, scratch_operands = 0 : i64, tpu.core_type = #tpu.core_type<tc>, window_params = [{transform_indices = @transform_0, window_bounds = array<i64: 16, 128>}, {transform_indices = @transform_1, window_bounds = array<i64: 16, 128>}, {transform_indices = @transform_2, window_bounds = array<i64: 8, 128>}, {transform_indices = @transform_3, window_bounds = array<i64: 8, 128>}, {transform_indices = @transform_4, window_bounds = array<i64: 8, 128>}, {transform_indices = @transform_5, window_bounds = array<i64: 8, 128>}, {transform_indices = @transform_6, window_bounds = array<i64: 1, 8, 128>}, {transform_indices = @transform_7, window_bounds = array<i64: 1, 8, 128>}, {transform_indices = @transform_8, window_bounds = array<i64: 1, 8, 128>}]} {
    %c1_i32 = arith.constant 1 : i32
    %0 = arith.muli %arg1, %c1_i32 : i32
    %1 = arith.addi %0, %arg0 : i32
    %c0_i32 = arith.constant 0 : i32
    %2 = arith.cmpi eq, %arg1, %c0_i32 : i32
    %3 = arith.extui %2 : i1 to i32
    %c0_i32_0 = arith.constant 0 : i32
    %4 = arith.cmpi ne, %3, %c0_i32_0 : i32
    scf.if %4 {
      %cst = arith.constant 0.000000e+00 : f32
      %14 = vector.broadcast %cst : f32 to vector<1x8x128xf32>
      %c0 = arith.constant 0 : index
      %c0_7 = arith.constant 0 : index
      %c0_8 = arith.constant 0 : index
      %15 = vector.load %arg8[%c0, %c0_7, %c0_8] : memref<1x8x128xf32, #tpu.memory_space<vmem>>, vector<1x8x128xf32>
      tpu.vector_store %arg8[%c0, %c0_7, %c0_8], %14 {strides = array<i32>} : memref<1x8x128xf32, #tpu.memory_space<vmem>>, vector<1x8x128xf32>,
      %cst_9 = arith.constant 0.000000e+00 : f32
      %16 = vector.broadcast %cst_9 : f32 to vector<1x8x128xf32>
      %c0_10 = arith.constant 0 : index
      %c0_11 = arith.constant 0 : index
      %c0_12 = arith.constant 0 : index
      %17 = vector.load %arg9[%c0_10, %c0_11, %c0_12] : memref<1x8x128xf32, #tpu.memory_space<vmem>>, vector<1x8x128xf32>
      tpu.vector_store %arg9[%c0_10, %c0_11, %c0_12], %16 {strides = array<i32>} : memref<1x8x128xf32, #tpu.memory_space<vmem>>, vector<1x8x128xf32>,
      %cst_13 = arith.constant 0.000000e+00 : f32
      %18 = vector.broadcast %cst_13 : f32 to vector<1x8x128xf32>
      %c0_14 = arith.constant 0 : index
      %c0_15 = arith.constant 0 : index
      %c0_16 = arith.constant 0 : index
      %19 = vector.load %arg10[%c0_14, %c0_15, %c0_16] : memref<1x8x128xf32, #tpu.memory_space<vmem>>, vector<1x8x128xf32>
      tpu.vector_store %arg10[%c0_14, %c0_15, %c0_16], %18 {strides = array<i32>} : memref<1x8x128xf32, #tpu.memory_space<vmem>>, vector<1x8x128xf32>,
    } else {
    }
    %c1_i32_1 = arith.constant 1 : i32
    %5 = arith.cmpi slt, %1, %c1_i32_1 : i32
    %6 = arith.extui %5 : i1 to i32
    %c0_i32_2 = arith.constant 0 : i32
    %7 = arith.cmpi ne, %6, %c0_i32_2 : i32
    scf.if %7 {
      %c0 = arith.constant 0 : index
      %c0_7 = arith.constant 0 : index
      %14 = vector.load %arg2[%c0, %c0_7] : memref<16x128xf32, #tpu.memory_space<vmem>>, vector<16x128xf32>
      %c0_8 = arith.constant 0 : index
      %c0_9 = arith.constant 0 : index
      %15 = vector.load %arg3[%c0_8, %c0_9] : memref<16x128xf32, #tpu.memory_space<vmem>>, vector<16x128xf32>
      %16 = arith.subf %14, %15 : vector<16x128xf32>
      %17 = arith.mulf %16, %16 : vector<16x128xf32>
      %c0_i32_10 = arith.constant 0 : i32
      %18 = arith.cmpi slt, %1, %c0_i32_10 : i32
      %19 = arith.extui %18 : i1 to i32
      %c0_i32_11 = arith.constant 0 : i32
      %20 = arith.cmpi ne, %19, %c0_i32_11 : i32
      scf.if %20 {
        %c0_14 = arith.constant 0 : index
        %c0_15 = arith.constant 0 : index
        %c0_16 = arith.constant 0 : index
        %24 = vector.load %arg8[%c0_14, %c0_15, %c0_16] : memref<1x8x128xf32, #tpu.memory_space<vmem>>, vector<1x8x128xf32>
        %25 = vector.shape_cast %17 : vector<16x128xf32> to vector<2x8x128xf32>
        %cst = arith.constant dense<0.000000e+00> : vector<8x128xf32>
        %26 = vector.multi_reduction <add>, %25, %cst [0] : vector<2x8x128xf32> to vector<8x128xf32>
        %27 = vector.shape_cast %26 : vector<8x128xf32> to vector<1x8x128xf32>
        %28 = arith.addf %24, %27 : vector<1x8x128xf32>
        %c0_17 = arith.constant 0 : index
        %c0_18 = arith.constant 0 : index
        %c0_19 = arith.constant 0 : index
        %29 = vector.load %arg8[%c0_17, %c0_18, %c0_19] : memref<1x8x128xf32, #tpu.memory_space<vmem>>, vector<1x8x128xf32>
        tpu.vector_store %arg8[%c0_17, %c0_18, %c0_19], %28 {strides = array<i32>} : memref<1x8x128xf32, #tpu.memory_space<vmem>>, vector<1x8x128xf32>,
      } else {
      }
      %c0_i32_12 = arith.constant 0 : i32
      %21 = arith.cmpi eq, %1, %c0_i32_12 : i32
      %22 = arith.extui %21 : i1 to i32
      %c0_i32_13 = arith.constant 0 : i32
      %23 = arith.cmpi ne, %22, %c0_i32_13 : i32
      scf.if %23 {
        %24 = tpu.iota {dimensions = array<i32: 0>} : vector<16x128xi32>
        %25 = tpu.iota {dimensions = array<i32: 1>} : vector<16x128xi32>
        %c128_i32 = arith.constant 128 : i32
        %26 = vector.broadcast %c128_i32 : i32 to vector<16x128xi32>
        %27 = arith.muli %24, %26 : vector<16x128xi32>
        %28 = arith.addi %27, %25 : vector<16x128xi32>
        %c1536_i32 = arith.constant 1536 : i32
        %29 = vector.broadcast %c1536_i32 : i32 to vector<16x128xi32>
        %30 = arith.cmpi slt, %28, %29 : vector<16x128xi32>
        %c0_14 = arith.constant 0 : index
        %c0_15 = arith.constant 0 : index
        %c0_16 = arith.constant 0 : index
        %31 = vector.load %arg8[%c0_14, %c0_15, %c0_16] : memref<1x8x128xf32, #tpu.memory_space<vmem>>, vector<1x8x128xf32>
        %cst = arith.constant 0.000000e+00 : f32
        %32 = vector.broadcast %cst : f32 to vector<16x128xf32>
        %33 = arith.select %30, %17, %32 : vector<16x128xi1>, vector<16x128xf32>
        %34 = vector.shape_cast %33 : vector<16x128xf32> to vector<2x8x128xf32>
        %cst_17 = arith.constant dense<0.000000e+00> : vector<8x128xf32>
        %35 = vector.multi_reduction <add>, %34, %cst_17 [0] : vector<2x8x128xf32> to vector<8x128xf32>
        %36 = vector.shape_cast %35 : vector<8x128xf32> to vector<1x8x128xf32>
        %37 = arith.addf %31, %36 : vector<1x8x128xf32>
        %c0_18 = arith.constant 0 : index
        %c0_19 = arith.constant 0 : index
        %c0_20 = arith.constant 0 : index
        %38 = vector.load %arg8[%c0_18, %c0_19, %c0_20] : memref<1x8x128xf32, #tpu.memory_space<vmem>>, vector<1x8x128xf32>
        tpu.vector_store %arg8[%c0_18, %c0_19, %c0_20], %37 {strides = array<i32>} : memref<1x8x128xf32, #tpu.memory_space<vmem>>, vector<1x8x128xf32>,
      } else {
      }
    } else {
    }
    %c1_i32_3 = arith.constant 1 : i32
    %8 = arith.cmpi slt, %1, %c1_i32_3 : i32
    %9 = arith.extui %8 : i1 to i32
    %c0_i32_4 = arith.constant 0 : i32
    %10 = arith.cmpi ne, %9, %c0_i32_4 : i32
    scf.if %10 {
      %c0 = arith.constant 0 : index
      %c0_7 = arith.constant 0 : index
      %14 = vector.load %arg4[%c0, %c0_7] : memref<8x128xf32, #tpu.memory_space<vmem>>, vector<8x128xf32>
      %c0_8 = arith.constant 0 : index
      %c0_9 = arith.constant 0 : index
      %15 = vector.load %arg5[%c0_8, %c0_9] : memref<8x128xf32, #tpu.memory_space<vmem>>, vector<8x128xf32>
      %c0_10 = arith.constant 0 : index
      %c0_11 = arith.constant 0 : index
      %16 = vector.load %arg6[%c0_10, %c0_11] : memref<8x128xf32, #tpu.memory_space<vmem>>, vector<8x128xf32>
      %17 = tpu.reciprocal %15 {approx = true} : vector<8x128xf32> -> vector<8x128xf32>
      %18 = arith.mulf %15, %17 : vector<8x128xf32>
      %cst = arith.constant 2.000000e+00 : f32
      %19 = vector.broadcast %cst : f32 to vector<8x128xf32>
      %20 = arith.subf %19, %18 : vector<8x128xf32>
      %21 = arith.mulf %17, %20 : vector<8x128xf32>
      %cst_12 = arith.constant 1.41421354 : f32
      %22 = vector.broadcast %cst_12 : f32 to vector<8x128xf32>
      %23 = arith.mulf %21, %22 : vector<8x128xf32>
      %24 = arith.subf %16, %14 : vector<8x128xf32>
      %cst_13 = arith.constant 5.000000e-01 : f32
      %25 = vector.broadcast %cst_13 : f32 to vector<8x128xf32>
      %26 = arith.addf %24, %25 : vector<8x128xf32>
      %27 = arith.mulf %26, %23 : vector<8x128xf32>
      %28 = math.erf %27 : vector<8x128xf32>
      %cst_14 = arith.constant 5.000000e-01 : f32
      %29 = vector.broadcast %cst_14 : f32 to vector<8x128xf32>
      %30 = arith.subf %24, %29 : vector<8x128xf32>
      %31 = arith.mulf %30, %23 : vector<8x128xf32>
      %32 = math.erf %31 : vector<8x128xf32>
      %33 = arith.subf %28, %32 : vector<8x128xf32>
      %34 = math.absf %33 : vector<8x128xf32>
      %35 = math.log %34 : vector<8x128xf32>
      %c0_i32_15 = arith.constant 0 : i32
      %36 = arith.cmpi slt, %1, %c0_i32_15 : i32
      %37 = arith.extui %36 : i1 to i32
      %c0_i32_16 = arith.constant 0 : i32
      %38 = arith.cmpi ne, %37, %c0_i32_16 : i32
      scf.if %38 {
        %c0_19 = arith.constant 0 : index
        %c0_20 = arith.constant 0 : index
        %c0_21 = arith.constant 0 : index
        %42 = vector.load %arg9[%c0_19, %c0_20, %c0_21] : memref<1x8x128xf32, #tpu.memory_space<vmem>>, vector<1x8x128xf32>
        %43 = vector.shape_cast %35 : vector<8x128xf32> to vector<1x8x128xf32>
        %cst_22 = arith.constant dense<0.000000e+00> : vector<8x128xf32>
        %44 = vector.multi_reduction <add>, %43, %cst_22 [0] : vector<1x8x128xf32> to vector<8x128xf32>
        %45 = vector.shape_cast %44 : vector<8x128xf32> to vector<1x8x128xf32>
        %46 = arith.addf %42, %45 : vector<1x8x128xf32>
        %c0_23 = arith.constant 0 : index
        %c0_24 = arith.constant 0 : index
        %c0_25 = arith.constant 0 : index
        %47 = vector.load %arg9[%c0_23, %c0_24, %c0_25] : memref<1x8x128xf32, #tpu.memory_space<vmem>>, vector<1x8x128xf32>
        tpu.vector_store %arg9[%c0_23, %c0_24, %c0_25], %46 {strides = array<i32>} : memref<1x8x128xf32, #tpu.memory_space<vmem>>, vector<1x8x128xf32>,
      } else {
      }
      %c0_i32_17 = arith.constant 0 : i32
      %39 = arith.cmpi eq, %1, %c0_i32_17 : i32
      %40 = arith.extui %39 : i1 to i32
      %c0_i32_18 = arith.constant 0 : i32
      %41 = arith.cmpi ne, %40, %c0_i32_18 : i32
      scf.if %41 {
        %42 = tpu.iota {dimensions = array<i32: 0>} : vector<8x128xi32>
        %43 = tpu.iota {dimensions = array<i32: 1>} : vector<8x128xi32>
        %c128_i32 = arith.constant 128 : i32
        %44 = vector.broadcast %c128_i32 : i32 to vector<8x128xi32>
        %45 = arith.muli %42, %44 : vector<8x128xi32>
        %46 = arith.addi %45, %43 : vector<8x128xi32>
        %c512_i32 = arith.constant 512 : i32
        %47 = vector.broadcast %c512_i32 : i32 to vector<8x128xi32>
        %48 = arith.cmpi slt, %46, %47 : vector<8x128xi32>
        %c0_19 = arith.constant 0 : index
        %c0_20 = arith.constant 0 : index
        %c0_21 = arith.constant 0 : index
        %49 = vector.load %arg9[%c0_19, %c0_20, %c0_21] : memref<1x8x128xf32, #tpu.memory_space<vmem>>, vector<1x8x128xf32>
        %cst_22 = arith.constant 0.000000e+00 : f32
        %50 = vector.broadcast %cst_22 : f32 to vector<8x128xf32>
        %51 = arith.select %48, %35, %50 : vector<8x128xi1>, vector<8x128xf32>
        %52 = vector.shape_cast %51 : vector<8x128xf32> to vector<1x8x128xf32>
        %cst_23 = arith.constant dense<0.000000e+00> : vector<8x128xf32>
        %53 = vector.multi_reduction <add>, %52, %cst_23 [0] : vector<1x8x128xf32> to vector<8x128xf32>
        %54 = vector.shape_cast %53 : vector<8x128xf32> to vector<1x8x128xf32>
        %55 = arith.addf %49, %54 : vector<1x8x128xf32>
        %c0_24 = arith.constant 0 : index
        %c0_25 = arith.constant 0 : index
        %c0_26 = arith.constant 0 : index
        %56 = vector.load %arg9[%c0_24, %c0_25, %c0_26] : memref<1x8x128xf32, #tpu.memory_space<vmem>>, vector<1x8x128xf32>
        tpu.vector_store %arg9[%c0_24, %c0_25, %c0_26], %55 {strides = array<i32>} : memref<1x8x128xf32, #tpu.memory_space<vmem>>, vector<1x8x128xf32>,
      } else {
      }
    } else {
    }
    %c1_i32_5 = arith.constant 1 : i32
    %11 = arith.cmpi slt, %1, %c1_i32_5 : i32
    %12 = arith.extui %11 : i1 to i32
    %c0_i32_6 = arith.constant 0 : i32
    %13 = arith.cmpi ne, %12, %c0_i32_6 : i32
    scf.if %13 {
      %c0 = arith.constant 0 : index
      %c0_7 = arith.constant 0 : index
      %14 = vector.load %arg7[%c0, %c0_7] : memref<8x128xf32, #tpu.memory_space<vmem>>, vector<8x128xf32>
      %cst = arith.constant 5.000000e-01 : f32
      %15 = vector.broadcast %cst : f32 to vector<8x128xf32>
      %16 = arith.addf %14, %15 : vector<8x128xf32>
      %17 = arith.negf %16 : vector<8x128xf32>
      %18 = math.exp %17 : vector<8x128xf32>
      %cst_8 = arith.constant 1.000000e+00 : f32
      %19 = vector.broadcast %cst_8 : f32 to vector<8x128xf32>
      %20 = arith.addf %19, %18 : vector<8x128xf32>
      %21 = arith.divf %19, %20 : vector<8x128xf32>
      %cst_9 = arith.constant 5.000000e-01 : f32
      %22 = vector.broadcast %cst_9 : f32 to vector<8x128xf32>
      %23 = arith.subf %14, %22 : vector<8x128xf32>
      %24 = arith.negf %23 : vector<8x128xf32>
      %25 = math.exp %24 : vector<8x128xf32>
      %cst_10 = arith.constant 1.000000e+00 : f32
      %26 = vector.broadcast %cst_10 : f32 to vector<8x128xf32>
      %27 = arith.addf %26, %25 : vector<8x128xf32>
      %28 = arith.divf %26, %27 : vector<8x128xf32>
      %29 = arith.subf %21, %28 : vector<8x128xf32>
      %30 = math.absf %29 : vector<8x128xf32>
      %31 = math.log %30 : vector<8x128xf32>
      %c0_i32_11 = arith.constant 0 : i32
      %32 = arith.cmpi slt, %1, %c0_i32_11 : i32
      %33 = arith.extui %32 : i1 to i32
      %c0_i32_12 = arith.constant 0 : i32
      %34 = arith.cmpi ne, %33, %c0_i32_12 : i32
      scf.if %34 {
        %c0_15 = arith.constant 0 : index
        %c0_16 = arith.constant 0 : index
        %c0_17 = arith.constant 0 : index
        %38 = vector.load %arg10[%c0_15, %c0_16, %c0_17] : memref<1x8x128xf32, #tpu.memory_space<vmem>>, vector<1x8x128xf32>
        %39 = vector.shape_cast %31 : vector<8x128xf32> to vector<1x8x128xf32>
        %cst_18 = arith.constant dense<0.000000e+00> : vector<8x128xf32>
        %40 = vector.multi_reduction <add>, %39, %cst_18 [0] : vector<1x8x128xf32> to vector<8x128xf32>
        %41 = vector.shape_cast %40 : vector<8x128xf32> to vector<1x8x128xf32>
        %42 = arith.addf %38, %41 : vector<1x8x128xf32>
        %c0_19 = arith.constant 0 : index
        %c0_20 = arith.constant 0 : index
        %c0_21 = arith.constant 0 : index
        %43 = vector.load %arg10[%c0_19, %c0_20, %c0_21] : memref<1x8x128xf32, #tpu.memory_space<vmem>>, vector<1x8x128xf32>
        tpu.vector_store %arg10[%c0_19, %c0_20, %c0_21], %42 {strides = array<i32>} : memref<1x8x128xf32, #tpu.memory_space<vmem>>, vector<1x8x128xf32>,
      } else {
      }
      %c0_i32_13 = arith.constant 0 : i32
      %35 = arith.cmpi eq, %1, %c0_i32_13 : i32
      %36 = arith.extui %35 : i1 to i32
      %c0_i32_14 = arith.constant 0 : i32
      %37 = arith.cmpi ne, %36, %c0_i32_14 : i32
      scf.if %37 {
        %38 = tpu.iota {dimensions = array<i32: 0>} : vector<8x128xi32>
        %39 = tpu.iota {dimensions = array<i32: 1>} : vector<8x128xi32>
        %c128_i32 = arith.constant 128 : i32
        %40 = vector.broadcast %c128_i32 : i32 to vector<8x128xi32>
        %41 = arith.muli %38, %40 : vector<8x128xi32>
        %42 = arith.addi %41, %39 : vector<8x128xi32>
        %c128_i32_15 = arith.constant 128 : i32
        %43 = vector.broadcast %c128_i32_15 : i32 to vector<8x128xi32>
        %44 = arith.cmpi slt, %42, %43 : vector<8x128xi32>
        %c0_16 = arith.constant 0 : index
        %c0_17 = arith.constant 0 : index
        %c0_18 = arith.constant 0 : index
        %45 = vector.load %arg10[%c0_16, %c0_17, %c0_18] : memref<1x8x128xf32, #tpu.memory_space<vmem>>, vector<1x8x128xf32>
        %cst_19 = arith.constant 0.000000e+00 : f32
        %46 = vector.broadcast %cst_19 : f32 to vector<8x128xf32>
        %47 = arith.select %44, %31, %46 : vector<8x128xi1>, vector<8x128xf32>
        %48 = vector.shape_cast %47 : vector<8x128xf32> to vector<1x8x128xf32>
        %cst_20 = arith.constant dense<0.000000e+00> : vector<8x128xf32>
        %49 = vector.multi_reduction <add>, %48, %cst_20 [0] : vector<1x8x128xf32> to vector<8x128xf32>
        %50 = vector.shape_cast %49 : vector<8x128xf32> to vector<1x8x128xf32>
        %51 = arith.addf %45, %50 : vector<1x8x128xf32>
        %c0_21 = arith.constant 0 : index
        %c0_22 = arith.constant 0 : index
        %c0_23 = arith.constant 0 : index
        %52 = vector.load %arg10[%c0_21, %c0_22, %c0_23] : memref<1x8x128xf32, #tpu.memory_space<vmem>>, vector<1x8x128xf32>
        tpu.vector_store %arg10[%c0_21, %c0_22, %c0_23], %51 {strides = array<i32>} : memref<1x8x128xf32, #tpu.memory_space<vmem>>, vector<1x8x128xf32>,
      } else {
      }
    } else {
    }
    return
  }
  func.func @transform_0(%arg0: i32, %arg1: i32) -> (i32, i32) {
    %c1_i32 = arith.constant 1 : i32
    %0 = arith.muli %arg1, %c1_i32 : i32
    %1 = arith.addi %0, %arg0 : i32
    %c0_i32 = arith.constant 0 : i32
    %2 = arith.minsi %1, %c0_i32 : i32
    %c0_i32_0 = arith.constant 0 : i32
    %c0_i32_1 = arith.constant 0 : i32
    return %2, %c0_i32_0 : i32, i32
  }
  func.func @transform_1(%arg0: i32, %arg1: i32) -> (i32, i32) {
    %c1_i32 = arith.constant 1 : i32
    %0 = arith.muli %arg1, %c1_i32 : i32
    %1 = arith.addi %0, %arg0 : i32
    %c0_i32 = arith.constant 0 : i32
    %2 = arith.minsi %1, %c0_i32 : i32
    %c0_i32_0 = arith.constant 0 : i32
    %c0_i32_1 = arith.constant 0 : i32
    return %2, %c0_i32_0 : i32, i32
  }
  func.func @transform_2(%arg0: i32, %arg1: i32) -> (i32, i32) {
    %c1_i32 = arith.constant 1 : i32
    %0 = arith.muli %arg1, %c1_i32 : i32
    %1 = arith.addi %0, %arg0 : i32
    %c0_i32 = arith.constant 0 : i32
    %2 = arith.minsi %1, %c0_i32 : i32
    %c0_i32_0 = arith.constant 0 : i32
    %c0_i32_1 = arith.constant 0 : i32
    return %2, %c0_i32_0 : i32, i32
  }
  func.func @transform_3(%arg0: i32, %arg1: i32) -> (i32, i32) {
    %c1_i32 = arith.constant 1 : i32
    %0 = arith.muli %arg1, %c1_i32 : i32
    %1 = arith.addi %0, %arg0 : i32
    %c0_i32 = arith.constant 0 : i32
    %2 = arith.minsi %1, %c0_i32 : i32
    %c0_i32_0 = arith.constant 0 : i32
    %c0_i32_1 = arith.constant 0 : i32
    return %2, %c0_i32_0 : i32, i32
  }
  func.func @transform_4(%arg0: i32, %arg1: i32) -> (i32, i32) {
    %c1_i32 = arith.constant 1 : i32
    %0 = arith.muli %arg1, %c1_i32 : i32
    %1 = arith.addi %0, %arg0 : i32
    %c0_i32 = arith.constant 0 : i32
    %2 = arith.minsi %1, %c0_i32 : i32
    %c0_i32_0 = arith.constant 0 : i32
    %c0_i32_1 = arith.constant 0 : i32
    return %2, %c0_i32_0 : i32, i32
  }
  func.func @transform_5(%arg0: i32, %arg1: i32) -> (i32, i32) {
    %c1_i32 = arith.constant 1 : i32
    %0 = arith.muli %arg1, %c1_i32 : i32
    %1 = arith.addi %0, %arg0 : i32
    %c0_i32 = arith.constant 0 : i32
    %2 = arith.minsi %1, %c0_i32 : i32
    %c0_i32_0 = arith.constant 0 : i32
    %c0_i32_1 = arith.constant 0 : i32
    return %2, %c0_i32_0 : i32, i32
  }
  func.func @transform_6(%arg0: i32, %arg1: i32) -> (i32, i32, i32) {
    %c0_i32 = arith.constant 0 : i32
    %c0_i32_0 = arith.constant 0 : i32
    %c0_i32_1 = arith.constant 0 : i32
    return %arg0, %c0_i32, %c0_i32_0 : i32, i32, i32
  }
  func.func @transform_7(%arg0: i32, %arg1: i32) -> (i32, i32, i32) {
    %c0_i32 = arith.constant 0 : i32
    %c0_i32_0 = arith.constant 0 : i32
    %c0_i32_1 = arith.constant 0 : i32
    return %arg0, %c0_i32, %c0_i32_0 : i32, i32, i32
  }
  func.func @transform_8(%arg0: i32, %arg1: i32) -> (i32, i32, i32) {
    %c0_i32 = arith.constant 0 : i32
    %c0_i32_0 = arith.constant 0 : i32
    %c0_i32_1 = arith.constant 0 : i32
    return %arg0, %c0_i32, %c0_i32_0 : i32, i32, i32
  }
}

</mosaic_0001>

<llo_original>
// kernel: tpu_custom_call.1
$region0: #{tpu_custom_call.1}
  #allocation0 [shape = 'u32[]', space=smem, size = 0x4, offset = 0x4, fixed_abs, tag = 'smem constant byte address 0x4 - core index']
  #allocation1 [shape = 'u32[144,128]{1,0:T(1,128)}', space=vmem, size = 0x12000, scoped, tag = 'internal scratch']
  %s0 = inlined_call_operand.hbm [shape: f32[16,128], index: 0, kind: input, shape index: {}]
  %s1 = inlined_call_operand.hbm [shape: f32[16,128], index: 1, kind: input, shape index: {}]
  %s2 = inlined_call_operand.hbm [shape: f32[8,128], index: 2, kind: input, shape index: {}]
  %s3 = inlined_call_operand.vmem [shape: f32[8,128], index: 3, kind: input, shape index: {}]
  %s4 = inlined_call_operand.hbm [shape: f32[8,128], index: 4, kind: input, shape index: {}]
  %s5 = inlined_call_operand.vmem [shape: f32[8,128], index: 5, kind: input, shape index: {}]
  %s6 = inlined_call_operand.hbm [shape: f32[1,8,128], index: 6, kind: output, shape index: {0}]
  %s7 = inlined_call_operand.hbm [shape: f32[1,8,128], index: 7, kind: output, shape index: {1}]
  %s8 = inlined_call_operand.hbm [shape: f32[1,8,128], index: 8, kind: output, shape index: {2}]
  %9 = xla_tuple %s6, %s7, %s8
  %s10 = sld [smem:[#allocation0]]
  $region98: #{tpu_custom_call.1} parent=0
    _
  %s12 = ssub.s32 1, %s10
  %s13 = scalar_select 0, %s12, %s10
  $region1: #{tpu_custom_call.1} parent=0
    #allocation2 [shape = 'u8[8192]{0}', space=vmem, size = 0x2000, scoped, tag = 'input window, operand 0, single buffered']
    #allocation3 [shape = 's32[1]{0}', space=sflag, size = 0x4, scoped, tag = 'scoped memory for tpu_custom_call.1']
    #allocation4 [shape = 's32[1]{0}', space=sflag, size = 0x4, scoped, tag = 'scoped memory for tpu_custom_call.1']
    #allocation5 [shape = 'u8[8192]{0}', space=vmem, size = 0x2000, scoped, tag = 'input window, operand 1, single buffered']
    #allocation6 [shape = 's32[1]{0}', space=sflag, size = 0x4, scoped, tag = 'scoped memory for tpu_custom_call.1']
    #allocation7 [shape = 'u8[4096]{0}', space=vmem, size = 0x1000, scoped, tag = 'input window, operand 2, single buffered']
    #allocation8 [shape = 'u8[4096]{0}', space=vmem, size = 0x1000, scoped, tag = 'input window, operand 4, single buffered']
    #allocation9 [shape = 's32[1]{0}', space=sflag, size = 0x4, scoped, tag = 'scoped memory for tpu_custom_call.1']
    #allocation10 [shape = 'u8[4096]{0}', space=vmem, size = 0x1000, scoped, tag = 'output window, operand 0, single buffered']
    #allocation11 [shape = 'u8[4096]{0}', space=vmem, size = 0x1000, scoped, tag = 'output window, operand 1, single buffered']
    #allocation12 [shape = 's32[1]{0}', space=sflag, size = 0x4, scoped, tag = 'scoped memory for tpu_custom_call.1']
    #allocation13 [shape = 'u8[4096]{0}', space=vmem, size = 0x1000, scoped, tag = 'output window, operand 2, single buffered']
    %14 = vsyncpa [#allocation3], 0
    %15 = vsyncpa [#allocation6], 0
    %16 = vsyncpa [#allocation9], 0
    %17 = vsyncpa [#allocation4], 0
    %18 = vsyncpa [#allocation12], 0
    // Predicated region
    $region2: #{tpu_custom_call.1} parent=1 // pred_check
      _
    $region3: #{tpu_custom_call.1} parent=1 // pred_check_branch
      %20 = sbr.rel (0) target = $region5
    $region4: #{tpu_custom_call.1} parent=1 // pred_region
      %s21 = sadd.s32 0, 0
      %p22 = scmp.lt.s32.totalorder %s21, 0
      %s23 = scalar_select %p22, %s21, 0
      %s24 = smul.u32 2, %s23
      %s26 = ssub.s32 256, 256
      %27 = vsyncadd [#allocation3], %s26
      %s28 = smul.addr %s24, 128
      %s29 = scalar_lea.hbm %s0, %s28
      %s30 = sshll.u32 [#allocation2], 4
      %s31 = int_to_ptr.vmem [resolvable:$true] %s30
      %36 = dma.hbm_to_vmem [thread:$0]  %s29, 256, %s31, [#allocation3], 128, 128, 8
    $region5: #{tpu_custom_call.1} parent=1 // pred_fallthru
      _
    // Predicated region
    $region6: #{tpu_custom_call.1} parent=1 // pred_check
      _
    $region7: #{tpu_custom_call.1} parent=1 // pred_check_branch
      %38 = sbr.rel (0) target = $region9
    $region8: #{tpu_custom_call.1} parent=1 // pred_region
      %s39 = sadd.s32 0, 0
      %p40 = scmp.lt.s32.totalorder %s39, 0
      %s41 = scalar_select %p40, %s39, 0
      %s42 = smul.u32 2, %s41
      %s44 = ssub.s32 256, 256
      %45 = vsyncadd [#allocation6], %s44
      %s46 = smul.addr %s42, 128
      %s47 = scalar_lea.hbm %s1, %s46
      %s48 = sshll.u32 [#allocation5], 4
      %s49 = int_to_ptr.vmem [resolvable:$true] %s48
      %54 = dma.hbm_to_vmem [thread:$0]  %s47, 256, %s49, [#allocation6], 128, 128, 8
    $region9: #{tpu_custom_call.1} parent=1 // pred_fallthru
      _
    // Predicated region
    $region10: #{tpu_custom_call.1} parent=1 // pred_check
      _
    $region11: #{tpu_custom_call.1} parent=1 // pred_check_branch
      %56 = sbr.rel (0) target = $region13
    $region12: #{tpu_custom_call.1} parent=1 // pred_region
      %s57 = sadd.s32 0, 0
      %p58 = scmp.lt.s32.totalorder %s57, 0
      %s59 = scalar_select %p58, %s57, 0
      %s61 = ssub.s32 128, 128
      %62 = vsyncadd [#allocation6], %s61
      %s63 = smul.addr %s59, 128
      %s64 = scalar_lea.hbm %s2, %s63
      %s66 = sshll.u32 [#allocation7], 4
      %s67 = int_to_ptr.vmem [resolvable:$true] %s66
      %69 = dma.hbm_to_vmem [thread:$0]  %s64, 128, %s67, [#allocation6]
    $region13: #{tpu_custom_call.1} parent=1 // pred_fallthru
      _
    // Predicated region
    $region14: #{tpu_custom_call.1} parent=1 // pred_check
      _
    $region15: #{tpu_custom_call.1} parent=1 // pred_check_branch
      %71 = sbr.rel (0) target = $region17
    $region16: #{tpu_custom_call.1} parent=1 // pred_region
      %s72 = sadd.s32 0, 0
      %p73 = scmp.lt.s32.totalorder %s72, 0
      %s74 = scalar_select %p73, %s72, 0
      %p75 = scmp.lt.s32.totalorder %s74, 0
      %s76 = scalar_select %p75, %s74, 0
      %s77 = smul.addr %s76, 8
      %s78 = scalar_lea.vmem %s3, %s77
      %s79 = sadd.s32 0, 0
      %p80 = scmp.lt.s32.totalorder %s79, 0
      %s81 = scalar_select %p80, %s79, 0
    $region17: #{tpu_custom_call.1} parent=1 // pred_fallthru
      _
    // Predicated region
    $region18: #{tpu_custom_call.1} parent=1 // pred_check
      _
    $region19: #{tpu_custom_call.1} parent=1 // pred_check_branch
      %83 = sbr.rel (0) target = $region21
    $region20: #{tpu_custom_call.1} parent=1 // pred_region
      %s84 = sadd.s32 0, 0
      %p85 = scmp.lt.s32.totalorder %s84, 0
      %s86 = scalar_select %p85, %s84, 0
      %s88 = ssub.s32 128, 128
      %89 = vsyncadd [#allocation9], %s88
      %s90 = smul.addr %s86, 128
      %s91 = scalar_lea.hbm %s4, %s90
      %s93 = sshll.u32 [#allocation8], 4
      %s94 = int_to_ptr.vmem [resolvable:$true] %s93
      %96 = dma.hbm_to_vmem [thread:$0]  %s91, 128, %s94, [#allocation9]
    $region21: #{tpu_custom_call.1} parent=1 // pred_fallthru
      _
    // Predicated region
    $region22: #{tpu_custom_call.1} parent=1 // pred_check
      _
    $region23: #{tpu_custom_call.1} parent=1 // pred_check_branch
      %98 = sbr.rel (0) target = $region25
    $region24: #{tpu_custom_call.1} parent=1 // pred_region
      %s99 = sadd.s32 0, 0
      %p100 = scmp.lt.s32.totalorder %s99, 0
      %s101 = scalar_select %p100, %s99, 0
      %p102 = scmp.lt.s32.totalorder %s101, 0
      %s103 = scalar_select %p102, %s101, 0
      %s104 = smul.addr %s103, 8
      %s105 = scalar_lea.vmem %s5, %s104
      %s106 = sadd.s32 0, 0
      %p107 = scmp.lt.s32.totalorder %s106, 0
      %s108 = scalar_select %p107, %s106, 0
    $region25: #{tpu_custom_call.1} parent=1 // pred_fallthru
      _
    // Predicated region
    $region26: #{tpu_custom_call.1} parent=1 // pred_check
      _
    $region27: #{tpu_custom_call.1} parent=1 // pred_check_branch
      %110 = sbr.rel (0) target = $region29
    $region28: #{tpu_custom_call.1} parent=1 // pred_region
      %111 = dma.done [#allocation3], 256
    $region29: #{tpu_custom_call.1} parent=1 // pred_fallthru
      _
    // Predicated region
    $region30: #{tpu_custom_call.1} parent=1 // pred_check
      _
    $region31: #{tpu_custom_call.1} parent=1 // pred_check_branch
      %113 = sbr.rel (0) target = $region33
    $region32: #{tpu_custom_call.1} parent=1 // pred_region
      %114 = dma.done [#allocation6], 256
    $region33: #{tpu_custom_call.1} parent=1 // pred_fallthru
      _
    // Predicated region
    $region34: #{tpu_custom_call.1} parent=1 // pred_check
      _
    $region35: #{tpu_custom_call.1} parent=1 // pred_check_branch
      %116 = sbr.rel (0) target = $region37
    $region36: #{tpu_custom_call.1} parent=1 // pred_region
      %117 = dma.done [#allocation6], 128
    $region37: #{tpu_custom_call.1} parent=1 // pred_fallthru
      _
    // Predicated region
    $region38: #{tpu_custom_call.1} parent=1 // pred_check
      _
    $region39: #{tpu_custom_call.1} parent=1 // pred_check_branch
      %119 = sbr.rel (0) target = $region41
    $region40: #{tpu_custom_call.1} parent=1 // pred_region
      %120 = dma.done [#allocation9], 128
    $region41: #{tpu_custom_call.1} parent=1 // pred_fallthru
      _
    %s121 = sadd.s32 0, 0
    %p122 = scmp.lt.s32.totalorder %s121, 0
    %s123 = scalar_select %p122, %s121, 0
    %p124 = scmp.lt.s32.totalorder %s123, 0
    %s125 = scalar_select %p124, %s123, 0
    %s126 = smul.addr %s125, 8
    %s127 = scalar_lea.vmem %s3, %s126
    %s128 = sadd.s32 0, 0
    %p129 = scmp.lt.s32.totalorder %s128, 0
    %s130 = scalar_select %p129, %s128, 0
    %p131 = scmp.lt.s32.totalorder %s130, 0
    %s132 = scalar_select %p131, %s130, 0
    %s133 = smul.addr %s132, 8
    %s134 = scalar_lea.vmem %s5, %s133
    %s135 = sadd.s32 0, 0
    %p136 = scmp.lt.s32.totalorder %s135, 0
    %s137 = scalar_select %p136, %s135, 0
    %s138 = smul.u32 2, %s137
    %s139 = sadd.s32 0, 0
    %p140 = scmp.lt.s32.totalorder %s139, 0
    %s141 = scalar_select %p140, %s139, 0
    %s142 = smul.u32 2, %s141
    %s143 = sadd.s32 0, 0
    %p144 = scmp.lt.s32.totalorder %s143, 0
    %s145 = scalar_select %p144, %s143, 0
    %s146 = sadd.s32 0, 0
    %p147 = scmp.lt.s32.totalorder %s146, 0
    %s148 = scalar_select %p147, %s146, 0
    %p149 = scmp.lt.s32.totalorder %s148, 0
    %s150 = scalar_select %p149, %s148, 0
    %s151 = smul.addr %s150, 8
    %s152 = scalar_lea.vmem %s3, %s151
    %s153 = sadd.s32 0, 0
    %p154 = scmp.lt.s32.totalorder %s153, 0
    %s155 = scalar_select %p154, %s153, 0
    %s156 = sadd.s32 0, 0
    %p157 = scmp.lt.s32.totalorder %s156, 0
    %s158 = scalar_select %p157, %s156, 0
    %s159 = sadd.s32 0, 0
    %p160 = scmp.lt.s32.totalorder %s159, 0
    %s161 = scalar_select %p160, %s159, 0
    %p162 = scmp.lt.s32.totalorder %s161, 0
    %s163 = scalar_select %p162, %s161, 0
    %s164 = smul.addr %s163, 8
    %s165 = scalar_lea.vmem %s5, %s164
    %s166 = sadd.s32 0, 0
    %p167 = scmp.lt.s32.totalorder %s166, 0
    %s168 = scalar_select %p167, %s166, 0
    %s169 = sadd.s32 0, 0
    %p170 = scmp.eq.s32.totalorder 0, 0
    // Predicated region
    $region42: #{tpu_custom_call.1} parent=1 // pred_check
      %p171 = pneg %p170
    $region43: #{tpu_custom_call.1} parent=1 // pred_check_branch
      %173 = sbr.rel (%p171) target = $region45
    $region44: #{tpu_custom_call.1} parent=1 // pred_region
      %174 = vst [vmem:[#allocation10] sm:$0xff] 0.0
      %175 = vst [vmem:[#allocation11] sm:$0xff] 0.0
      %176 = vst [vmem:[#allocation13] sm:$0xff] 0.0
    $region45: #{tpu_custom_call.1} parent=1 // pred_fallthru
      _
    %p177 = scmp.lt.s32.totalorder %s169, 1
    // Predicated region
    $region46: #{tpu_custom_call.1} parent=1 // pred_check
      %p178 = pneg %p177
    $region47: #{tpu_custom_call.1} parent=1 // pred_check_branch
      %180 = sbr.rel (%p178) target = $region49
    $region48: #{tpu_custom_call.1} parent=1 // pred_region
      %v181 = vld [vmem:[#allocation2] sm:$0xff]
      %v182 = vld [vmem:[#allocation2 + $0x8] sm:$0xff]
      %v183 = vld [vmem:[#allocation5] sm:$0xff]
      %v184 = vld [vmem:[#allocation5 + $0x8] sm:$0xff]
      %v185 = vsub.f32 %v181, %v183
      %v186 = vsub.f32 %v182, %v184
      %v187 = vmul.f32 %v185, %v185
      %v188 = vmul.f32 %v186, %v186
      %p189 = scmp.lt.s32.totalorder %s169, 0
      // Predicated region
      $region50: #{tpu_custom_call.1} parent=48 // pred_check
        %p190 = pneg %p189
      $region51: #{tpu_custom_call.1} parent=48 // pred_check_branch
        %192 = sbr.rel (%p190) target = $region53
      $region52: #{tpu_custom_call.1} parent=48 // pred_region
        %v193 = vld [vmem:[#allocation10] sm:$0xff]
        %v194 = vadd.f32 %v187, %v188
        %v195 = vadd.f32 %v193, %v194
        %196 = vst [vmem:[#allocation10] sm:$0xff] %v195
      $region53: #{tpu_custom_call.1} parent=48 // pred_fallthru
        _
      %p197 = scmp.eq.s32.totalorder %s169, 0
      // Predicated region
      $region54: #{tpu_custom_call.1} parent=48 // pred_check
        %p198 = pneg %p197
      $region55: #{tpu_custom_call.1} parent=48 // pred_check_branch
        %200 = sbr.rel (%p198) target = $region57
      $region56: #{tpu_custom_call.1} parent=48 // pred_region
        %v201 = vlaneseq
        %v202 = vshrl.u32 %v201, 7
        %v203 = vadd.s32 %v202, 8
        %v204 = vlaneseq
        %v205 = vand.u32 %v204, 127
        %v206 = vmul.u32 %v202, 128
        %v207 = vmul.u32 %v203, 128
        %v208 = vadd.s32 %v206, %v205
        %v209 = vadd.s32 %v207, %v205
        %vm210 = vcmp.lt.s32.totalorder %v208, 1536
        %vm211 = vcmp.lt.s32.totalorder %v209, 1536
        %v212 = vld [vmem:[#allocation10] sm:$0xff]
        %v213 = vsel %vm210, %v187, 0.0
        %v214 = vsel %vm211, %v188, 0.0
        %v215 = vadd.f32 %v213, %v214
        %v216 = vadd.f32 %v212, %v215
        %217 = vst [vmem:[#allocation10] sm:$0xff] %v216
      $region57: #{tpu_custom_call.1} parent=48 // pred_fallthru
        _
      %v218 = vld [vmem:[#allocation7] sm:$0xff]
      %v219 = vld [vmem:[%s152] sm:$0xff]
      %v220 = vld [vmem:[#allocation8] sm:$0xff]
      %v221 = vrcp.pop %v219
      %v222 = vmul.f32 %v219, %v221
      %v223 = vsub.f32 2.0, %v222
      %v224 = vmul.f32 %v221, %v223
      %v225 = vmul.f32 %v224, 1.4142135
      %v226 = vsub.f32 %v220, %v218
      %v227 = vadd.f32 %v226, 0.5
      %v228 = vmul.f32 %v227, %v225
      %v229 = verf.f32.pop %v228
      %v230 = vsub.f32 %v226, 0.5
      %v231 = vmul.f32 %v230, %v225
      %v232 = verf.f32.pop %v231
      %v233 = vsub.f32 %v229, %v232
      %v234 = vand.u32 2147483647, %v233
      %v235 = vlog2.pop %v234
      %v236 = vmul.f32 %v235, 0.6931472
      // Predicated region
      $region58: #{tpu_custom_call.1} parent=48 // pred_check
        %p237 = pneg %p189
      $region59: #{tpu_custom_call.1} parent=48 // pred_check_branch
        %239 = sbr.rel (%p237) target = $region61
      $region60: #{tpu_custom_call.1} parent=48 // pred_region
        %v240 = vld [vmem:[#allocation11] sm:$0xff]
        %v241 = vadd.f32 %v236, 0.0
        %v242 = vadd.f32 %v240, %v241
        %243 = vst [vmem:[#allocation11] sm:$0xff] %v242
      $region61: #{tpu_custom_call.1} parent=48 // pred_fallthru
        _
      // Predicated region
      $region62: #{tpu_custom_call.1} parent=48 // pred_check
        %p244 = pneg %p197
      $region63: #{tpu_custom_call.1} parent=48 // pred_check_branch
        %246 = sbr.rel (%p244) target = $region65
      $region64: #{tpu_custom_call.1} parent=48 // pred_region
        %v247 = vlaneseq
        %v248 = vshrl.u32 %v247, 7
        %v249 = vlaneseq
        %v250 = vand.u32 %v249, 127
        %v251 = vmul.u32 %v248, 128
        %v252 = vadd.s32 %v251, %v250
        %vm253 = vcmp.lt.s32.totalorder %v252, 512
        %v254 = vld [vmem:[#allocation11] sm:$0xff]
        %v255 = vsel %vm253, %v236, 0.0
        %v256 = vadd.f32 %v255, 0.0
        %v257 = vadd.f32 %v254, %v256
        %258 = vst [vmem:[#allocation11] sm:$0xff] %v257
      $region65: #{tpu_custom_call.1} parent=48 // pred_fallthru
        _
      %v259 = vld [vmem:[%s165] sm:$0xff]
      %v260 = vadd.f32 %v259, 0.5
      %v261 = vxor.u32 %v260, 2147483648
      %v262 = vmul.f32 %v261, 1.442695
      %v263 = vpow.pop %v262
      %v264 = vadd.f32 %v263, 1.0
      %v265 = vrcp.pop %v264
      %v266 = vmul.f32 1.0, %v265
      %v267 = vsub.f32 %v259, 0.5
      %v268 = vxor.u32 %v267, 2147483648
      %v269 = vmul.f32 %v268, 1.442695
      %v270 = vpow.pop %v269
      %v271 = vadd.f32 %v270, 1.0
      %v272 = vrcp.pop %v271
      %v273 = vmul.f32 1.0, %v272
      %v274 = vsub.f32 %v266, %v273
      %v275 = vand.u32 2147483647, %v274
      %v276 = vlog2.pop %v275
      %v277 = vmul.f32 %v276, 0.6931472
      // Predicated region
      $region66: #{tpu_custom_call.1} parent=48 // pred_check
        %p278 = pneg %p189
      $region67: #{tpu_custom_call.1} parent=48 // pred_check_branch
        %280 = sbr.rel (%p278) target = $region69
      $region68: #{tpu_custom_call.1} parent=48 // pred_region
        %v281 = vld [vmem:[#allocation13] sm:$0xff]
        %v282 = vadd.f32 %v277, 0.0
        %v283 = vadd.f32 %v281, %v282
        %284 = vst [vmem:[#allocation13] sm:$0xff] %v283
      $region69: #{tpu_custom_call.1} parent=48 // pred_fallthru
        _
      // Predicated region
      $region70: #{tpu_custom_call.1} parent=48 // pred_check
        %p285 = pneg %p197
      $region71: #{tpu_custom_call.1} parent=48 // pred_check_branch
        %287 = sbr.rel (%p285) target = $region73
      $region72: #{tpu_custom_call.1} parent=48 // pred_region
        %v288 = vlaneseq
        %v289 = vshrl.u32 %v288, 7
        %v290 = vlaneseq
        %v291 = vand.u32 %v290, 127
        %v292 = vmul.u32 %v289, 128
        %v293 = vadd.s32 %v292, %v291
        %vm294 = vcmp.lt.s32.totalorder %v293, 128
        %v295 = vld [vmem:[#allocation13] sm:$0xff]
        %v296 = vsel %vm294, %v277, 0.0
        %v297 = vadd.f32 %v296, 0.0
        %v298 = vadd.f32 %v295, %v297
        %299 = vst [vmem:[#allocation13] sm:$0xff] %v298
      $region73: #{tpu_custom_call.1} parent=48 // pred_fallthru
        _
    $region49: #{tpu_custom_call.1} parent=1 // pred_fallthru
      _
    // Predicated region
    $region74: #{tpu_custom_call.1} parent=1 // pred_check
      _
    $region75: #{tpu_custom_call.1} parent=1 // pred_check_branch
      %301 = sbr.rel (0) target = $region77
    $region76: #{tpu_custom_call.1} parent=1 // pred_region
      %s303 = ssub.s32 128, 128
      %304 = vsyncadd [#allocation4], %s303
      %s306 = sshll.u32 [#allocation10], 4
      %s307 = int_to_ptr.vmem [resolvable:$true] %s306
      %309 = dma.vmem_to_hbm [thread:$0]  %s307, 128, %s6, [#allocation4]
    $region77: #{tpu_custom_call.1} parent=1 // pred_fallthru
      _
    // Predicated region
    $region78: #{tpu_custom_call.1} parent=1 // pred_check
      _
    $region79: #{tpu_custom_call.1} parent=1 // pred_check_branch
      %311 = sbr.rel (0) target = $region81
    $region80: #{tpu_custom_call.1} parent=1 // pred_region
      %s313 = ssub.s32 128, 128
      %314 = vsyncadd [#allocation12], %s313
      %s316 = sshll.u32 [#allocation11], 4
      %s317 = int_to_ptr.vmem [resolvable:$true] %s316
      %319 = dma.vmem_to_hbm [thread:$0]  %s317, 128, %s7, [#allocation12]
    $region81: #{tpu_custom_call.1} parent=1 // pred_fallthru
      _
    // Predicated region
    $region82: #{tpu_custom_call.1} parent=1 // pred_check
      _
    $region83: #{tpu_custom_call.1} parent=1 // pred_check_branch
      %321 = sbr.rel (0) target = $region85
    $region84: #{tpu_custom_call.1} parent=1 // pred_region
      %s323 = ssub.s32 128, 128
      %324 = vsyncadd [#allocation12], %s323
      %s326 = sshll.u32 [#allocation13], 4
      %s327 = int_to_ptr.vmem [resolvable:$true] %s326
      %329 = dma.vmem_to_hbm [thread:$0]  %s327, 128, %s8, [#allocation12]
    $region85: #{tpu_custom_call.1} parent=1 // pred_fallthru
      _
    // Predicated region
    $region86: #{tpu_custom_call.1} parent=1 // pred_check
      _
    $region87: #{tpu_custom_call.1} parent=1 // pred_check_branch
      %331 = sbr.rel (0) target = $region89
    $region88: #{tpu_custom_call.1} parent=1 // pred_region
      %332 = dma.done [#allocation4], 128
    $region89: #{tpu_custom_call.1} parent=1 // pred_fallthru
      _
    // Predicated region
    $region90: #{tpu_custom_call.1} parent=1 // pred_check
      _
    $region91: #{tpu_custom_call.1} parent=1 // pred_check_branch
      %334 = sbr.rel (0) target = $region93
    $region92: #{tpu_custom_call.1} parent=1 // pred_region
      %335 = dma.done [#allocation12], 128
    $region93: #{tpu_custom_call.1} parent=1 // pred_fallthru
      _
    // Predicated region
    $region94: #{tpu_custom_call.1} parent=1 // pred_check
      _
    $region95: #{tpu_custom_call.1} parent=1 // pred_check_branch
      %337 = sbr.rel (0) target = $region97
    $region96: #{tpu_custom_call.1} parent=1 // pred_region
      %338 = dma.done [#allocation12], 128
    $region97: #{tpu_custom_call.1} parent=1 // pred_fallthru
      _
    %339 = vsyncpa [#allocation3], 1
    %340 = vsyncpa [#allocation6], 1
    %341 = vsyncpa [#allocation9], 1
    %342 = vsyncpa [#allocation4], 1
    %343 = vsyncpa [#allocation12], 1

</llo_original>
